<compile_context>
chip_gen: v7x
topology: tpu7x:2x2x1
jax: 0.10.0
libtpu: 0.0.40
codegen_flags: <defaults>
</compile_context>

<pallas_src>
import jax
import jax.numpy as jnp
from jax.experimental import pallas as pl
from jax.experimental.pallas import tpu as pltpu

_NEG_LARGE = -1e30  # finite mask value for padded logits lanes (avoids inf-inf)


def _round_up(n, m):
    return ((n + m - 1) // m) * m


# --------------------------------------------------------------------------- #
# Kernel
# --------------------------------------------------------------------------- #
def _classifier_kernel(x_ref, w_ref, b_ref, o_ref, logits_ref, m_ref, l_ref):
    n = pl.program_id(1)
    grid_n, _, tn = logits_ref.shape  # trace-time Python ints

    # MXU matmul for this (tb, tn) logits tile; f32 accumulation, f32 bias add.
    logits = jnp.dot(x_ref[...], w_ref[...],
                     preferred_element_type=jnp.float32) + b_ref[...]

    # Stash the raw f32 logits tile (dynamic index on the leading scratch axis).
    logits_ref[n] = logits

    # Online logsumexp across N tiles: running max + rescaled running sum.
    tile_max = jnp.max(logits, axis=-1, keepdims=True)

    @pl.when(n == 0)
    def _init():
        m_ref[...] = tile_max
        l_ref[...] = jnp.sum(jnp.exp(logits - tile_max), axis=-1, keepdims=True)

    @pl.when(n > 0)
    def _update():
        m_old = m_ref[...]
        m_new = jnp.maximum(m_old, tile_max)
        l_ref[...] = (l_ref[...] * jnp.exp(m_old - m_new)
                      + jnp.sum(jnp.exp(logits - m_new), axis=-1, keepdims=True))
        m_ref[...] = m_new

    # Finalize on the last N step: subtract lse, emit lane-dense output tiles.
    @pl.when(n == pl.num_programs(1) - 1)
    def _finalize():
        lse = m_ref[...] + jnp.log(l_ref[...])
        for j in range(grid_n):  # static unroll -> aligned, unmasked vst
            o_ref[:, j * tn:(j + 1) * tn] = (logits_ref[j] - lse).astype(o_ref.dtype)


# --------------------------------------------------------------------------- #
# Wrapper-side helpers
# --------------------------------------------------------------------------- #
def _vmem_budget():
    """(usable budget for tile sizing, physical capacity) in bytes."""
    cap = 64 * 1024 * 1024  # conservative fallback (v7x per-core VMEM)
    try:
        cap = int(pltpu.get_tpu_info().vmem_capacity_bytes)
    except Exception:
        pass
    return int(cap * 0.75), cap


def _choose_tiles(B, in_dim, n_pad, mm_size, out_size, vmem_budget, block_b):
    # N tile: largest multiple of 128 (<= 2048) that divides n_pad exactly.
    tn_candidates = [t for t in (2048, 1024, 512, 256, 128)
                     if t <= n_pad and n_pad % t == 0]
    if not tn_candidates:
        tn_candidates = [n_pad]

    def round8(v):
        return _round_up(max(int(v), 1), 8)

    # Batch tile: MXU-aligned (multiple of 256) for large batches; otherwise
    # split into >=2 row tiles so the "parallel" batch axis can be sharded
    # across both v7x TensorCores.
    if B >= 512:
        tb = max(256, min(_round_up(block_b, 256), ((B // 2) // 256) * 256))
    elif B >= 16:
        tb = round8((B + 1) // 2)
    else:
        tb = round8(B)

    def vmem_need(tb_, tn_):
        return (2 * tb_ * in_dim * mm_size        # x tile (double-buffered)
                + 2 * in_dim * tn_ * mm_size      # streamed weight N-tile
                + 2 * 8 * tn_ * 4                 # bias N-tile (sublane-padded)
                + 2 * tb_ * n_pad * out_size      # output tile
                + tb_ * n_pad * 4                 # f32 logits stash
                + 2 * tb_ * 128 * 4)              # running max / sum

    ti, tn = 0, tn_candidates[0]
    while vmem_need(tb, tn) > vmem_budget:
        if ti + 1 < len(tn_candidates):
            ti += 1
            tn = tn_candidates[ti]
        elif tb > 8:
            tb = round8(tb // 2)
        else:
            break
    return tb, tn, vmem_need(tb, tn)


def pack_classifier_weights(weight, bias, *, mm_dtype=jnp.bfloat16):
    """One-time packing of PyTorch-layout (out_dim, in_dim) Linear parameters
    into the lane-dense (in_dim, n_pad) layout the kernel consumes.  Padded
    lanes get zero weight and a -1e30 bias so they drop out of the logsumexp."""
    out_dim, in_dim = weight.shape
    n_pad = _round_up(max(out_dim, 128), 128)
    wt = weight.T.astype(mm_dtype)
    if out_dim == n_pad:
        w_p = wt
        b_p = bias.astype(jnp.float32).reshape(1, out_dim)
    else:
        w_p = jnp.zeros((in_dim, n_pad), mm_dtype).at[:, :out_dim].set(wt)
        b_p = jnp.full((1, n_pad), _NEG_LARGE, jnp.float32).at[0, :out_dim].set(
            bias.astype(jnp.float32))
    return w_p, b_p


def classifier_forward(x, w_packed, b_packed, out_dim, *, out_dtype=None,
                       block_b=512):
    """log_softmax(x @ W + b, axis=-1) on packed (in_dim, n_pad) weights."""
    B, in_dim = x.shape
    assert w_packed.shape[0] == in_dim
    n_pad = w_packed.shape[1]
    mm_dtype = w_packed.dtype
    out_dtype = x.dtype if out_dtype is None else out_dtype
    mm_size = jnp.dtype(mm_dtype).itemsize
    out_size = jnp.dtype(out_dtype).itemsize

    vmem_budget, vmem_cap = _vmem_budget()
    tb, tn, need = _choose_tiles(B, in_dim, n_pad, mm_size, out_size,
                                 vmem_budget, block_b)
    b_pad = _round_up(B, tb)
    grid_b = b_pad // tb
    grid_n = n_pad // tn

    # Only copy/cast x when unavoidable (ragged batch tile or operand cast).
    if b_pad != B:
        x_in = jnp.zeros((b_pad, in_dim), mm_dtype).at[:B].set(x.astype(mm_dtype))
    elif x.dtype != mm_dtype:
        x_in = x.astype(mm_dtype)
    else:
        x_in = x

    vmem_limit = int(min(max(need * 5 // 4, 32 * 1024 * 1024),
                         int(vmem_cap * 0.9)))

    out_padded = pl.pallas_call(
        _classifier_kernel,
        out_shape=jax.ShapeDtypeStruct((b_pad, n_pad), out_dtype),
        grid=(grid_b, grid_n),
        in_specs=[
            pl.BlockSpec((tb, in_dim), lambda i, n: (i, 0)),   # x rows (held over n)
            pl.BlockSpec((in_dim, tn), lambda i, n: (0, n)),   # streamed weight tile
            pl.BlockSpec((1, tn), lambda i, n: (0, n)),        # streamed bias tile
        ],
        out_specs=pl.BlockSpec((tb, n_pad), lambda i, n: (i, 0)),
        scratch_shapes=[
            pltpu.VMEM((grid_n, tb, tn), jnp.float32),   # raw f32 logits stash
            pltpu.VMEM((tb, 1), jnp.float32),            # running max
            pltpu.VMEM((tb, 1), jnp.float32),            # running (rescaled) sum
        ],
        compiler_params=pltpu.CompilerParams(
            dimension_semantics=("parallel", "arbitrary"),
            vmem_limit_bytes=vmem_limit,
        ),
    )(x_in, w_packed, b_packed)

    if b_pad == B and n_pad == out_dim:
        return out_padded
    return out_padded[:B, :out_dim]


def classifier_apply(x, weight, bias, *, mm_dtype=jnp.bfloat16, out_dtype=None,
                     block_b=512):
    """Drop-in equivalent of Classifier.forward(x) for PyTorch-layout params."""
    w_p, b_p = pack_classifier_weights(weight, bias, mm_dtype=mm_dtype)
    return classifier_forward(x, w_p, b_p, weight.shape[0],
                              out_dtype=out_dtype, block_b=block_b)


# --------------------------------------------------------------------------- #
# Reference + test
# --------------------------------------------------------------------------- #
def reference_forward(x, weight, bias):
    logits = x @ weight.T + bias
    return jax.nn.log_softmax(logits, axis=-1)


def _make_inputs(key, B, in_dim, out_dim):
    k_x, k_w, k_b = jax.random.split(key, 3)
    x = jax.random.normal(k_x, (B, in_dim), dtype=jnp.float32)
    bound = 1.0 / (in_dim ** 0.5)
    weight = jax.random.uniform(k_w, (out_dim, in_dim), dtype=jnp.float32,
                                minval=-bound, maxval=bound)
    bias = jax.random.uniform(k_b, (out_dim,), dtype=jnp.float32,
                              minval=-bound, maxval=bound)
    return x, weight, bias


if __name__ == "__main__":
    key = jax.random.PRNGKey(0)
    k1, k2 = jax.random.split(key)

    # Case 1: module toy shapes (batch=8, in_dim=32, out_dim=16).
    x, w, b = _make_inputs(k1, 8, 32, 16)
    ref = reference_forward(x, w, b)

    # 1a: default bf16 MXU operands (bf16 MXUs on all of v5e/v6e/v7x).
    out = jax.block_until_ready(classifier_apply(x, w, b))
    assert out.shape == (8, 16)
    assert jnp.allclose(out, ref, atol=5e-2, rtol=5e-2), "bf16-operand mismatch"

    # 1b: exact f32 operand path.
    out_f32 = jax.block_until_ready(classifier_apply(x, w, b, mm_dtype=jnp.float32))
    assert jnp.allclose(out_f32, ref, atol=1e-5, rtol=1e-5), "f32 mismatch"

    # Case 2: batch padding (B=20 -> 2 row tiles of 16), lane padding
    # (out_dim=300 -> 384) and multi-tile online logsumexp (grid_n=3).
    x2, w2, b2 = _make_inputs(k2, 20, 64, 300)
    ref2 = reference_forward(x2, w2, b2)
    out2 = jax.block_until_ready(classifier_apply(x2, w2, b2, mm_dtype=jnp.float32))
    assert out2.shape == (20, 300)
    assert jnp.allclose(out2, ref2, atol=1e-5, rtol=1e-5), "padded-case mismatch"

    # 2b: default bf16 operands + bf16 output (halves the dominant HBM write).
    out2_bf = jax.block_until_ready(
        classifier_apply(x2, w2, b2, out_dtype=jnp.bfloat16))
    assert out2_bf.dtype == jnp.bfloat16
    assert jnp.allclose(out2_bf.astype(jnp.float32), ref2, atol=1e-1, rtol=1e-1), \
        "bf16-output mismatch"

    print("KERNEL_OK")
</pallas_src>

<mosaic_0001>
module attributes {stable_mosaic.version = 11 : i64} {
  func.func @_classifier_kernel(%arg0: i32, %arg1: i32, %arg2: memref<8x32xbf16, #tpu.memory_space<vmem>>, %arg3: memref<32x128xbf16, #tpu.memory_space<vmem>>, %arg4: memref<1x128xf32, #tpu.memory_space<vmem>>, %arg5: memref<8x128xf32, #tpu.memory_space<vmem>>, %arg6: memref<1x8x128xf32, #tpu.memory_space<vmem>>, %arg7: memref<8x1xf32, #tpu.memory_space<vmem>>, %arg8: memref<8x1xf32, #tpu.memory_space<vmem>>) attributes {dimension_semantics = [#tpu.dimension_semantics<parallel>, #tpu.dimension_semantics<arbitrary>], iteration_bounds = array<i64: 1, 1>, scalar_prefetch = 0 : i64, scratch_operands = 3 : i64, tpu.core_type = #tpu.core_type<tc>, window_params = [{transform_indices = @transform_0, window_bounds = array<i64: 8, 32>}, {transform_indices = @transform_1, window_bounds = array<i64: 32, 128>}, {transform_indices = @transform_2, window_bounds = array<i64: 1, 128>}, {transform_indices = @transform_3, window_bounds = array<i64: 8, 128>}]} {
    %c0 = arith.constant 0 : index
    %c0_0 = arith.constant 0 : index
    %0 = vector.load %arg2[%c0, %c0_0] : memref<8x32xbf16, #tpu.memory_space<vmem>>, vector<8x32xbf16>
    %c0_1 = arith.constant 0 : index
    %c0_2 = arith.constant 0 : index
    %1 = vector.load %arg3[%c0_1, %c0_2] : memref<32x128xbf16, #tpu.memory_space<vmem>>, vector<32x128xbf16>
    %cst = arith.constant dense<0.000000e+00> : vector<8x128xf32>
    %2 = tpu.matmul %0, %1, %cst {dimension_numbers = #tpu.dot_dimension_numbers<[1], [0], [0], [1], [0, 0, 1, 1], [], []>} : vector<8x32xbf16>, vector<32x128xbf16>, vector<8x128xf32> -> vector<8x128xf32>
    %c0_3 = arith.constant 0 : index
    %c0_4 = arith.constant 0 : index
    %3 = vector.load %arg4[%c0_3, %c0_4] : memref<1x128xf32, #tpu.memory_space<vmem>>, vector<1x128xf32>
    %4 = vector.broadcast %3 : vector<1x128xf32> to vector<8x128xf32>
    %5 = arith.addf %2, %4 : vector<8x128xf32>
    %6 = arith.index_cast %arg1 : i32 to index
    %c0_5 = arith.constant 0 : index
    %c0_6 = arith.constant 0 : index
    %7 = vector.load %arg6[%6, %c0_5, %c0_6] : memref<1x8x128xf32, #tpu.memory_space<vmem>>, vector<1x8x128xf32>
    %8 = vector.shape_cast %7 : vector<1x8x128xf32> to vector<8x128xf32>
    %9 = vector.shape_cast %5 : vector<8x128xf32> to vector<1x8x128xf32>
    tpu.vector_store %arg6[%6, %c0_5, %c0_6], %9 {strides = array<i32>} : memref<1x8x128xf32, #tpu.memory_space<vmem>>, vector<1x8x128xf32>,
    %cst_7 = arith.constant dense<0xFF800000> : vector<8xf32>
    %10 = vector.multi_reduction <maximumf>, %5, %cst_7 [1] : vector<8x128xf32> to vector<8xf32>
    %11 = vector.shape_cast %10 : vector<8xf32> to vector<8x1xf32>
    %c0_i32 = arith.constant 0 : i32
    %12 = arith.cmpi eq, %arg1, %c0_i32 : i32
    %13 = arith.extui %12 : i1 to i32
    %c0_i32_8 = arith.constant 0 : i32
    %14 = arith.cmpi ne, %13, %c0_i32_8 : i32
    scf.if %14 {
      %c0_13 = arith.constant 0 : index
      %c0_14 = arith.constant 0 : index
      %21 = vector.load %arg7[%c0_13, %c0_14] : memref<8x1xf32, #tpu.memory_space<vmem>>, vector<8x1xf32>
      tpu.vector_store %arg7[%c0_13, %c0_14], %11 {strides = array<i32>} : memref<8x1xf32, #tpu.memory_space<vmem>>, vector<8x1xf32>,
      %22 = vector.broadcast %11 : vector<8x1xf32> to vector<8x128xf32>
      %23 = arith.subf %5, %22 : vector<8x128xf32>
      %24 = math.exp %23 : vector<8x128xf32>
      %cst_15 = arith.constant dense<0.000000e+00> : vector<8xf32>
      %25 = vector.multi_reduction <add>, %24, %cst_15 [1] : vector<8x128xf32> to vector<8xf32>
      %26 = vector.shape_cast %25 : vector<8xf32> to vector<8x1xf32>
      %c0_16 = arith.constant 0 : index
      %c0_17 = arith.constant 0 : index
      %27 = vector.load %arg8[%c0_16, %c0_17] : memref<8x1xf32, #tpu.memory_space<vmem>>, vector<8x1xf32>
      tpu.vector_store %arg8[%c0_16, %c0_17], %26 {strides = array<i32>} : memref<8x1xf32, #tpu.memory_space<vmem>>, vector<8x1xf32>,
    } else {
    }
    %c0_i32_9 = arith.constant 0 : i32
    %15 = arith.cmpi sgt, %arg1, %c0_i32_9 : i32
    %16 = arith.extui %15 : i1 to i32
    %c0_i32_10 = arith.constant 0 : i32
    %17 = arith.cmpi ne, %16, %c0_i32_10 : i32
    scf.if %17 {
      %c0_13 = arith.constant 0 : index
      %c0_14 = arith.constant 0 : index
      %21 = vector.load %arg7[%c0_13, %c0_14] : memref<8x1xf32, #tpu.memory_space<vmem>>, vector<8x1xf32>
      %22 = arith.maximumf %21, %11 : vector<8x1xf32>
      %c0_15 = arith.constant 0 : index
      %c0_16 = arith.constant 0 : index
      %23 = vector.load %arg8[%c0_15, %c0_16] : memref<8x1xf32, #tpu.memory_space<vmem>>, vector<8x1xf32>
      %24 = arith.subf %21, %22 : vector<8x1xf32>
      %25 = math.exp %24 : vector<8x1xf32>
      %26 = arith.mulf %23, %25 : vector<8x1xf32>
      %27 = vector.broadcast %22 : vector<8x1xf32> to vector<8x128xf32>
      %28 = arith.subf %5, %27 : vector<8x128xf32>
      %29 = math.exp %28 : vector<8x128xf32>
      %cst_17 = arith.constant dense<0.000000e+00> : vector<8xf32>
      %30 = vector.multi_reduction <add>, %29, %cst_17 [1] : vector<8x128xf32> to vector<8xf32>
      %31 = vector.shape_cast %30 : vector<8xf32> to vector<8x1xf32>
      %32 = arith.addf %26, %31 : vector<8x1xf32>
      %c0_18 = arith.constant 0 : index
      %c0_19 = arith.constant 0 : index
      %33 = vector.load %arg8[%c0_18, %c0_19] : memref<8x1xf32, #tpu.memory_space<vmem>>, vector<8x1xf32>
      tpu.vector_store %arg8[%c0_18, %c0_19], %32 {strides = array<i32>} : memref<8x1xf32, #tpu.memory_space<vmem>>, vector<8x1xf32>,
      %c0_20 = arith.constant 0 : index
      %c0_21 = arith.constant 0 : index
      %34 = vector.load %arg7[%c0_20, %c0_21] : memref<8x1xf32, #tpu.memory_space<vmem>>, vector<8x1xf32>
      tpu.vector_store %arg7[%c0_20, %c0_21], %22 {strides = array<i32>} : memref<8x1xf32, #tpu.memory_space<vmem>>, vector<8x1xf32>,
    } else {
    }
    %c0_i32_11 = arith.constant 0 : i32
    %18 = arith.cmpi eq, %arg1, %c0_i32_11 : i32
    %19 = arith.extui %18 : i1 to i32
    %c0_i32_12 = arith.constant 0 : i32
    %20 = arith.cmpi ne, %19, %c0_i32_12 : i32
    scf.if %20 {
      %c0_13 = arith.constant 0 : index
      %c0_14 = arith.constant 0 : index
      %21 = vector.load %arg7[%c0_13, %c0_14] : memref<8x1xf32, #tpu.memory_space<vmem>>, vector<8x1xf32>
      %c0_15 = arith.constant 0 : index
      %c0_16 = arith.constant 0 : index
      %22 = vector.load %arg8[%c0_15, %c0_16] : memref<8x1xf32, #tpu.memory_space<vmem>>, vector<8x1xf32>
      %23 = math.log %22 : vector<8x1xf32>
      %24 = arith.addf %21, %23 : vector<8x1xf32>
      %c0_17 = arith.constant 0 : index
      %c0_18 = arith.constant 0 : index
      %c0_19 = arith.constant 0 : index
      %25 = vector.load %arg6[%c0_17, %c0_18, %c0_19] : memref<1x8x128xf32, #tpu.memory_space<vmem>>, vector<1x8x128xf32>
      %26 = vector.shape_cast %25 : vector<1x8x128xf32> to vector<8x128xf32>
      %27 = vector.broadcast %24 : vector<8x1xf32> to vector<8x128xf32>
      %28 = arith.subf %26, %27 : vector<8x128xf32>
      %c0_20 = arith.constant 0 : index
      %c0_21 = arith.constant 0 : index
      %29 = vector.load %arg5[%c0_20, %c0_21] : memref<8x128xf32, #tpu.memory_space<vmem>>, vector<8x128xf32>
      tpu.vector_store %arg5[%c0_20, %c0_21], %28 {strides = array<i32>} : memref<8x128xf32, #tpu.memory_space<vmem>>, vector<8x128xf32>,
    } else {
    }
    return
  }
  func.func @transform_0(%arg0: i32, %arg1: i32) -> (i32, i32) {
    %c0_i32 = arith.constant 0 : i32
    %c0_i32_0 = arith.constant 0 : i32
    return %arg0, %c0_i32 : i32, i32
  }
  func.func @transform_1(%arg0: i32, %arg1: i32) -> (i32, i32) {
    %c0_i32 = arith.constant 0 : i32
    %c0_i32_0 = arith.constant 0 : i32
    return %c0_i32, %arg1 : i32, i32
  }
  func.func @transform_2(%arg0: i32, %arg1: i32) -> (i32, i32) {
    %c0_i32 = arith.constant 0 : i32
    %c0_i32_0 = arith.constant 0 : i32
    return %c0_i32, %arg1 : i32, i32
  }
  func.func @transform_3(%arg0: i32, %arg1: i32) -> (i32, i32) {
    %c0_i32 = arith.constant 0 : i32
    %c0_i32_0 = arith.constant 0 : i32
    return %arg0, %c0_i32 : i32, i32
  }
}

</mosaic_0001>

<llo_original>
// kernel: tpu_custom_call.1
$region0: #{tpu_custom_call.1}
  #allocation0 [shape = 'u32[]', space=smem, size = 0x4, offset = 0x4, fixed_abs, tag = 'smem constant byte address 0x4 - core index']
  #allocation1 [shape = 'u32[144,128]{1,0:T(1,128)}', space=vmem, size = 0x12000, scoped, tag = 'internal scratch']
  #allocation2 [shape = 'f32[1,8,128]{2,1,0:T(8,128)}', space=vmem, size = 0x1000, scoped, tag = 'scratch operand']
  #allocation3 [shape = 'f32[8,1]{1,0:T(8,128)}', space=vmem, size = 0x1000, scoped, tag = 'scratch operand']
  #allocation4 [shape = 'f32[8,1]{1,0:T(8,128)}', space=vmem, size = 0x1000, scoped, tag = 'scratch operand']
  %s0 = inlined_call_operand.hbm [shape: bf16[8,32], index: 0, kind: input, shape index: {}]
  %s1 = inlined_call_operand.hbm [shape: bf16[32,128], index: 1, kind: input, shape index: {}]
  %s2 = inlined_call_operand.vmem [shape: f32[1,128], index: 2, kind: input, shape index: {}]
  %s3 = inlined_call_operand.hbm [shape: f32[8,128], index: 3, kind: output, shape index: {}]
  %s4 = sld [smem:[#allocation0]]
  $region42: #{tpu_custom_call.1} parent=0
    _
  %s6 = ssub.s32 1, %s4
  %s7 = scalar_select 0, %s6, %s4
  $region1: #{tpu_custom_call.1} parent=0
    #allocation5 [shape = 'u8[2048]{0}', space=vmem, size = 0x800, scoped, tag = 'input window, operand 0, single buffered']
    #allocation6 [shape = 's32[1]{0}', space=sflag, size = 0x4, scoped, tag = 'scoped memory for tpu_custom_call.1']
    #allocation7 [shape = 's32[1]{0}', space=sflag, size = 0x4, scoped, tag = 'scoped memory for tpu_custom_call.1']
    #allocation8 [shape = 'u8[8192]{0}', space=vmem, size = 0x2000, scoped, tag = 'input window, operand 1, single buffered']
    #allocation9 [shape = 's32[1]{0}', space=sflag, size = 0x4, scoped, tag = 'scoped memory for tpu_custom_call.1']
    #allocation10 [shape = 'u8[4096]{0}', space=vmem, size = 0x1000, scoped, tag = 'output window, operand 0, single buffered']
    %8 = vsyncpa [#allocation6], 0
    %9 = vsyncpa [#allocation9], 0
    %10 = vsyncpa [#allocation7], 0
    // Predicated region
    $region2: #{tpu_custom_call.1} parent=1 // pred_check
      _
    $region3: #{tpu_custom_call.1} parent=1 // pred_check_branch
      %12 = sbr.rel (0) target = $region5
    $region4: #{tpu_custom_call.1} parent=1 // pred_region
      %s14 = ssub.s32 64, 64
      %15 = vsyncadd [#allocation6], %s14
      %s17 = sshll.u32 [#allocation5], 4
      %s18 = int_to_ptr.vmem [resolvable:$true] %s17
      %20 = dma.hbm_to_vmem [thread:$0]  %s0, 64, %s18, [#allocation6]
    $region5: #{tpu_custom_call.1} parent=1 // pred_fallthru
      _
    // Predicated region
    $region6: #{tpu_custom_call.1} parent=1 // pred_check
      _
    $region7: #{tpu_custom_call.1} parent=1 // pred_check_branch
      %22 = sbr.rel (0) target = $region9
    $region8: #{tpu_custom_call.1} parent=1 // pred_region
      %s24 = ssub.s32 256, 256
      %25 = vsyncadd [#allocation9], %s24
      %s26 = sshll.u32 [#allocation8], 4
      %s27 = int_to_ptr.vmem [resolvable:$true] %s26
      %32 = dma.hbm_to_vmem [thread:$0]  %s1, 256, %s27, [#allocation9], 64, 64, 4
    $region9: #{tpu_custom_call.1} parent=1 // pred_fallthru
      _
    // Predicated region
    $region10: #{tpu_custom_call.1} parent=1 // pred_check
      _
    $region11: #{tpu_custom_call.1} parent=1 // pred_check_branch
      %34 = sbr.rel (0) target = $region13
    $region12: #{tpu_custom_call.1} parent=1 // pred_region
      _
    $region13: #{tpu_custom_call.1} parent=1 // pred_fallthru
      _
    // Predicated region
    $region14: #{tpu_custom_call.1} parent=1 // pred_check
      _
    $region15: #{tpu_custom_call.1} parent=1 // pred_check_branch
      %36 = sbr.rel (0) target = $region17
    $region16: #{tpu_custom_call.1} parent=1 // pred_region
      %37 = dma.done [#allocation6], 64
    $region17: #{tpu_custom_call.1} parent=1 // pred_fallthru
      _
    // Predicated region
    $region18: #{tpu_custom_call.1} parent=1 // pred_check
      _
    $region19: #{tpu_custom_call.1} parent=1 // pred_check_branch
      %39 = sbr.rel (0) target = $region21
    $region20: #{tpu_custom_call.1} parent=1 // pred_region
      %40 = dma.done [#allocation9], 256
    $region21: #{tpu_custom_call.1} parent=1 // pred_fallthru
      _
    %v42 = vld [vmem:[#allocation5] sm:$0xf]
    %v43 = vld [vmem:[#allocation8] sm:$0xf]
    %v44 = vld [vmem:[#allocation8 + $0x4] sm:$0xf]
    %v45 = vld [vmem:[#allocation8 + $0x8] sm:$0xf]
    %v46 = vld [vmem:[#allocation8 + $0xc] sm:$0xf]
    %v47 = vld [vmem:[%s2] sm:$0x1]
    %v49 = vlaneseq
    %v50 = vshrl.u32 %v49, 7
    %v51 = vsub.s32 0, %v50
    %v52 = vrot.slane %v47, %v51
    %v58 = vunpack.c.l.b16 %v43
    %v59 = vunpack.c.l.b16 %v44
    %v60 = vunpack.c.l.b16 %v45
    %v61 = vunpack.c.l.b16 %v46
    %v62 = vpack.c.b16 %v59, %v58
    %v63 = vpack.c.b16 %v61, %v60
    %vm66 = vcmask 261120
    %v68 = vsel %vm66, %v42, 0
    %70 = vmatprep.subr.bf16.mxu0 0
    %71 = vmatpush1.bf16.msra.mxu0 %v62
    %72 = vmatprep.subr.bf16.mxu0 0
    %73 = vmatpush1.bf16.msra.mxu0 %v63
    %74 = vmatprep.subr.bf16.mxu0 0
    %75 = vmatpush1.bf16.msra.mxu0 0
    %76 = vmatprep.subr.bf16.mxu0 0
    %77 = vmatpush1.bf16.msra.mxu0 0
    %78 = vmatprep.subr.bf16.mxu0 0
    %79 = vmatpush1.bf16.msra.mxu0 0
    %80 = vmatprep.subr.bf16.mxu0 0
    %81 = vmatpush1.bf16.msra.mxu0 0
    %82 = vmatprep.subr.bf16.mxu0 0
    %83 = vmatpush1.bf16.msra.mxu0 0
    %84 = vmatprep.subr.bf16.mxu0 0
    %85 = vmatpush1.bf16.msra.mxu0 0
    %86 = vmatprep.subr.bf16.mxu0 0
    %87 = vmatpush1.bf16.msra.mxu0 0
    %88 = vmatprep.subr.bf16.mxu0 0
    %89 = vmatpush1.bf16.msra.mxu0 0
    %90 = vmatprep.subr.bf16.mxu0 0
    %91 = vmatpush1.bf16.msra.mxu0 0
    %92 = vmatprep.subr.bf16.mxu0 0
    %93 = vmatpush1.bf16.msra.mxu0 0
    %94 = vmatprep.subr.bf16.mxu0 0
    %95 = vmatpush1.bf16.msra.mxu0 0
    %96 = vmatprep.subr.bf16.mxu0 0
    %97 = vmatpush1.bf16.msra.mxu0 0
    %98 = vmatprep.subr.bf16.mxu0 0
    %99 = vmatpush1.bf16.msra.mxu0 0
    %100 = vmatprep.subr.bf16.mxu0 0
    %101 = vmatpush1.bf16.msra.mxu0 0
    %102 = vmatprep.mubr.bf16.mxu0 0
    %103 = vmatmul.mubr.bf16.gmra.mrb[0].mxu0 %v68
    %v104 = vpop.f32.mrb[0].mxu0
    %v105 = vadd.f32 %v52, %v104
    %v106 = vpop.f32.mrb[0].mxu0
    %v107 = vpop.f32.mrb[0].mxu0
    %v108 = vpop.f32.mrb[0].mxu0
    %109 = vdwg.mxu0
    %s110 = smul.u32 0, 8
    %s111 = scalar_lea.vmem [#allocation2], %s110
    %112 = vst [vmem:[%s111] sm:$0xff] %v105
    %113 = vmax.xlane.f32.xlu0 %v105
    %v114 = vpop.xlane.xlu0 %113
    %p115 = scmp.eq.s32.totalorder 0, 0
    // Predicated region
    $region22: #{tpu_custom_call.1} parent=1 // pred_check
      %p116 = pneg %p115
    $region23: #{tpu_custom_call.1} parent=1 // pred_check_branch
      %118 = sbr.rel (%p116) target = $region25
    $region24: #{tpu_custom_call.1} parent=1 // pred_region
      %vm119 = vcmask 7168
      %120 = vst.msk [vmem:[#allocation3] sm:$0xff] %vm119, %v114
      %v121 = vsub.f32 %v105, %v114
      %v122 = vmul.f32 %v121, 1.442695
      %v123 = vpow.pop %v122
      %124 = vadd.xlane.f32.xlu0 %v123
      %v125 = vpop.xlane.xlu0 %124
      %126 = vst.msk [vmem:[#allocation4] sm:$0xff] %vm119, %v125
    $region25: #{tpu_custom_call.1} parent=1 // pred_fallthru
      _
    %p127 = scmp.gt.s32.totalorder 0, 0
    // Predicated region
    $region26: #{tpu_custom_call.1} parent=1 // pred_check
      %p128 = pneg %p127
    $region27: #{tpu_custom_call.1} parent=1 // pred_check_branch
      %130 = sbr.rel (%p128) target = $region29
    $region28: #{tpu_custom_call.1} parent=1 // pred_region
      %v131 = vld [vmem:[#allocation3] sm:$0xff]
      %v132 = vmax.f32 %v131, %v114
      %v133 = vld [vmem:[#allocation4] sm:$0xff]
      %v134 = vsub.f32 %v131, %v132
      %v135 = vmul.f32 %v134, 1.442695
      %v136 = vpow.pop %v135
      %v137 = vmul.f32 %v133, %v136
      %139 = vset.pattern.permute.xlu0 0
      %140 = vperm.xlu0 %139, %v132
      %v141 = vpop.permute.xlu0 %140
      %v143 = vsub.f32 %v105, %v141
      %v144 = vmul.f32 %v143, 1.442695
      %v145 = vpow.pop %v144
      %146 = vadd.xlane.f32.xlu0 %v145
      %v147 = vpop.xlane.xlu0 %146
      %v148 = vadd.f32 %v137, %v147
      %vm149 = vcmask 7168
      %150 = vst.msk [vmem:[#allocation4] sm:$0xff] %vm149, %v148
      %151 = vst.msk [vmem:[#allocation3] sm:$0xff] %vm149, %v132
    $region29: #{tpu_custom_call.1} parent=1 // pred_fallthru
      _
    // Predicated region
    $region30: #{tpu_custom_call.1} parent=1 // pred_check
      %p152 = pneg %p115
    $region31: #{tpu_custom_call.1} parent=1 // pred_check_branch
      %154 = sbr.rel (%p152) target = $region33
    $region32: #{tpu_custom_call.1} parent=1 // pred_region
      %v155 = vld [vmem:[#allocation3] sm:$0xff]
      %v156 = vld [vmem:[#allocation4] sm:$0xff]
      %v157 = vlog2.pop %v156
      %v158 = vmul.f32 %v157, 0.6931472
      %v159 = vadd.f32 %v155, %v158
      %v160 = vld [vmem:[#allocation2] sm:$0xff]
      %162 = vset.pattern.permute.xlu0 0
      %163 = vperm.xlu0 %162, %v159
      %v164 = vpop.permute.xlu0 %163
      %v166 = vsub.f32 %v160, %v164
      %167 = vst [vmem:[#allocation10] sm:$0xff] %v166
    $region33: #{tpu_custom_call.1} parent=1 // pred_fallthru
      _
    // Predicated region
    $region34: #{tpu_custom_call.1} parent=1 // pred_check
      _
    $region35: #{tpu_custom_call.1} parent=1 // pred_check_branch
      %169 = sbr.rel (0) target = $region37
    $region36: #{tpu_custom_call.1} parent=1 // pred_region
      %s171 = ssub.s32 128, 128
      %172 = vsyncadd [#allocation7], %s171
      %s174 = sshll.u32 [#allocation10], 4
      %s175 = int_to_ptr.vmem [resolvable:$true] %s174
      %177 = dma.vmem_to_hbm [thread:$0]  %s175, 128, %s3, [#allocation7]
    $region37: #{tpu_custom_call.1} parent=1 // pred_fallthru
      _
    // Predicated region
    $region38: #{tpu_custom_call.1} parent=1 // pred_check
      _
    $region39: #{tpu_custom_call.1} parent=1 // pred_check_branch
      %179 = sbr.rel (0) target = $region41
    $region40: #{tpu_custom_call.1} parent=1 // pred_region
      %180 = dma.done [#allocation7], 128
    $region41: #{tpu_custom_call.1} parent=1 // pred_fallthru
      _
    %181 = vsyncpa [#allocation6], 1
    %182 = vsyncpa [#allocation9], 1
    %183 = vsyncpa [#allocation7], 1

</llo_original>
